<compile_context>
chip_gen: v6e
topology: v6e:2x2x1
jax: 0.10.0
libtpu: 0.0.40
codegen_flags: <defaults>
</compile_context>

<pallas_src>
import jax
import jax.numpy as jnp
from jax import lax
from jax.experimental import pallas as pl
from jax.experimental.pallas import tpu as pltpu


def _residual_kernel(x_ref, w1_ref, w2_ref, o_ref):
    # x_ref : (N, Cin, L)     activations, PyTorch NCL layout
    # w1_ref: (Hres, 3*Cin)   packed Conv1d(k=3) weight, taps ordered [l-1 | l | l+1]
    # w2_ref: (Cout, Hres)    Conv1d(k=1) weight
    # o_ref : (N, Cout, L)    Cout == Cin (residual add)
    n_batch, c_in, seq = x_ref.shape
    n_cols = n_batch * seq

    # Fold batch into the lane (column) axis: (Cin, N*L).
    x2 = jnp.concatenate([x_ref[n] for n in range(n_batch)], axis=1)

    t = jnp.tanh(x2)                                            # first Tanh (EUP)

    # Position within each sequence, per column (for padding / batch boundaries).
    col = lax.broadcasted_iota(jnp.int32, (c_in, n_cols), 1)
    l_in_seq = col % seq

    # Shifted copies (x[l-1], x[l+1]); zero at per-sequence boundaries (conv padding=1).
    # jnp.roll with a static shift lowers to two lane slices + a concat.
    t_prev = jnp.where(l_in_seq == 0, 0.0, jnp.roll(t, 1, axis=1))
    t_next = jnp.where(l_in_seq == seq - 1, 0.0, jnp.roll(t, -1, axis=1))

    # Fuse the three conv taps into a single K = 3*Cin contraction.
    t_cat = jnp.concatenate([t_prev, t, t_next], axis=0)        # (3*Cin, N*L)

    y = jnp.dot(w1_ref[...], t_cat,
                preferred_element_type=jnp.float32)             # (Hres, N*L)  MXU
    h = jnp.tanh(y)                                             # second Tanh
    blk = jnp.dot(w2_ref[...], h,
                  preferred_element_type=jnp.float32)           # (Cout, N*L)  MXU

    out = (x2 + blk).astype(o_ref.dtype)                        # skip connection
    for n in range(n_batch):                                    # static unroll, NCL store
        o_ref[n] = out[:, n * seq:(n + 1) * seq]


def residual_forward(x_ncl, w1, w2):
    """x_ncl: (N, Cin, L) like PyTorch.
       w1: (Hres, Cin, 3)  = nn.Conv1d(Cin, Hres, k=3).weight
       w2: (Cout, Hres, 1) = nn.Conv1d(Hres, Cout, k=1).weight"""
    N, Cin, L = x_ncl.shape
    Hres = w1.shape[0]
    Cout = w2.shape[0]
    assert Cout == Cin, "residual add requires num_hiddens == in_channels"

    # Trace-time weight packing (tiny, constant-foldable):
    # W1p[h, k*Cin + c] = w1[h, c, k]  ->  taps ordered [x[l-1] | x[l] | x[l+1]].
    w1p = jnp.transpose(w1, (0, 2, 1)).reshape(Hres, 3 * Cin)
    w2p = w2[:, :, 0]

    return pl.pallas_call(
        _residual_kernel,
        out_shape=jax.ShapeDtypeStruct((N, Cout, L), x_ncl.dtype),
        grid=(1,),  # grid collapsed: one step handles the whole problem
        in_specs=[
            pl.BlockSpec((N, Cin, L), lambda i: (0, 0, 0)),
            pl.BlockSpec((Hres, 3 * Cin), lambda i: (0, 0)),
            pl.BlockSpec((Cout, Hres), lambda i: (0, 0)),
        ],
        out_specs=pl.BlockSpec((N, Cout, L), lambda i: (0, 0, 0)),
        compiler_params=pltpu.CompilerParams(
            dimension_semantics=("arbitrary",)),
    )(x_ncl, w1p, w2p)


def _reference(x_ncl, w1, w2):
    # Pure-JAX reference matching PyTorch semantics (NCL activations, OIW weights).
    t = jnp.tanh(x_ncl)
    y = lax.conv_general_dilated(
        t, w1, window_strides=(1,), padding=((1, 1),),
        dimension_numbers=("NCH", "OIH", "NCH"))
    h = jnp.tanh(y)
    blk = lax.conv_general_dilated(
        h, w2, window_strides=(1,), padding=((0, 0),),
        dimension_numbers=("NCH", "OIH", "NCH"))
    return x_ncl + blk


if __name__ == "__main__":
    # Residual(in_channels=32, num_hiddens=32, num_residual_hiddens=16)
    N, Cin, L = 2, 32, 16
    Hres, Cout = 16, 32

    key = jax.random.PRNGKey(0)
    kx, k1, k2 = jax.random.split(key, 3)
    x = jax.random.normal(kx, (N, Cin, L), dtype=jnp.float32)
    # PyTorch Conv1d weight layout: (out_channels, in_channels, kernel_size).
    w1 = 0.1 * jax.random.normal(k1, (Hres, Cin, 3), dtype=jnp.float32)
    w2 = 0.1 * jax.random.normal(k2, (Cout, Hres, 1), dtype=jnp.float32)

    out = residual_forward(x, w1, w2)
    jax.block_until_ready(out)

    ref = _reference(x, w1, w2)
    assert out.shape == (N, Cout, L)
    assert jnp.allclose(out, ref, atol=1e-5, rtol=1e-5)

    print("KERNEL_OK")
</pallas_src>

<mosaic_0001>
module attributes {stable_mosaic.version = 11 : i64} {
  func.func @_residual_kernel(%arg0: i32, %arg1: memref<2x32x16xf32, #tpu.memory_space<vmem>>, %arg2: memref<16x96xf32, #tpu.memory_space<vmem>>, %arg3: memref<32x16xf32, #tpu.memory_space<vmem>>, %arg4: memref<2x32x16xf32, #tpu.memory_space<vmem>>) attributes {dimension_semantics = [#tpu.dimension_semantics<arbitrary>], iteration_bounds = array<i64: 1>, scalar_prefetch = 0 : i64, scratch_operands = 0 : i64, tpu.core_type = #tpu.core_type<tc>, window_params = [{pipeline_mode = #tpu.pipeline_mode<synchronous>, transform_indices = @transform_0, window_bounds = array<i64: 2, 32, 16>}, {pipeline_mode = #tpu.pipeline_mode<synchronous>, transform_indices = @transform_1, window_bounds = array<i64: 16, 96>}, {pipeline_mode = #tpu.pipeline_mode<synchronous>, transform_indices = @transform_2, window_bounds = array<i64: 32, 16>}, {pipeline_mode = #tpu.pipeline_mode<synchronous>, transform_indices = @transform_3, window_bounds = array<i64: 2, 32, 16>}]} {
    %c0 = arith.constant 0 : index
    %c0_0 = arith.constant 0 : index
    %c0_1 = arith.constant 0 : index
    %0 = vector.load %arg1[%c0, %c0_0, %c0_1] : memref<2x32x16xf32, #tpu.memory_space<vmem>>, vector<1x32x16xf32>
    %1 = vector.shape_cast %0 : vector<1x32x16xf32> to vector<32x16xf32>
    %c1 = arith.constant 1 : index
    %c0_2 = arith.constant 0 : index
    %c0_3 = arith.constant 0 : index
    %2 = vector.load %arg1[%c1, %c0_2, %c0_3] : memref<2x32x16xf32, #tpu.memory_space<vmem>>, vector<1x32x16xf32>
    %3 = vector.shape_cast %2 : vector<1x32x16xf32> to vector<32x16xf32>
    %4 = tpu.concatenate %1, %3 in 1 : vector<32x16xf32>, vector<32x16xf32> -> vector<32x32xf32>
    %5 = math.tanh %4 : vector<32x32xf32>
    %6 = tpu.iota {dimensions = array<i32: 1>} : vector<32x32xi32>
    %c16_i32 = arith.constant 16 : i32
    %c0_i32 = arith.constant 0 : i32
    %7 = arith.cmpi eq, %c16_i32, %c0_i32 : i32
    %c1_i32 = arith.constant 1 : i32
    %8 = arith.select %7, %c1_i32, %c16_i32 : i32
    %9 = vector.broadcast %8 : i32 to vector<32x32xi32>
    %10 = arith.remsi %6, %9 : vector<32x32xi32>
    %c0_i32_4 = arith.constant 0 : i32
    %11 = vector.broadcast %c0_i32_4 : i32 to vector<32x32xi32>
    %12 = arith.cmpi ne, %10, %11 : vector<32x32xi32>
    %c0_i32_5 = arith.constant 0 : i32
    %13 = vector.broadcast %c0_i32_5 : i32 to vector<32x32xi32>
    %14 = arith.cmpi slt, %10, %13 : vector<32x32xi32>
    %c0_i32_6 = arith.constant 0 : i32
    %15 = arith.cmpi slt, %8, %c0_i32_6 : i32
    %16 = vector.broadcast %15 : i1 to vector<32x32xi1>
    %17 = vector.broadcast %16 : vector<32x32xi1> to vector<32x32xi1>
    %18 = arith.xori %14, %17 : vector<32x32xi1>
    %19 = arith.andi %18, %12 : vector<32x32xi1>
    %20 = vector.broadcast %8 : i32 to vector<32x32xi32>
    %21 = arith.addi %10, %20 : vector<32x32xi32>
    %22 = arith.select %19, %21, %10 : vector<32x32xi1>, vector<32x32xi32>
    %c0_i32_7 = arith.constant 0 : i32
    %23 = vector.broadcast %c0_i32_7 : i32 to vector<32x32xi32>
    %24 = arith.cmpi eq, %22, %23 : vector<32x32xi32>
    %25 = vector.extract_strided_slice %5 {offsets = [0, 31], sizes = [32, 1], strides = [1, 1]} : vector<32x32xf32> to vector<32x1xf32>
    %26 = vector.extract_strided_slice %5 {offsets = [0, 0], sizes = [32, 31], strides = [1, 1]} : vector<32x32xf32> to vector<32x31xf32>
    %27 = tpu.concatenate %25, %26 in 1 : vector<32x1xf32>, vector<32x31xf32> -> vector<32x32xf32>
    %cst = arith.constant 0.000000e+00 : f32
    %28 = vector.broadcast %cst : f32 to vector<32x32xf32>
    %29 = arith.select %24, %28, %27 : vector<32x32xi1>, vector<32x32xf32>
    %c15_i32 = arith.constant 15 : i32
    %30 = vector.broadcast %c15_i32 : i32 to vector<32x32xi32>
    %31 = arith.cmpi eq, %22, %30 : vector<32x32xi32>
    %32 = vector.extract_strided_slice %5 {offsets = [0, 1], sizes = [32, 31], strides = [1, 1]} : vector<32x32xf32> to vector<32x31xf32>
    %33 = vector.extract_strided_slice %5 {offsets = [0, 0], sizes = [32, 1], strides = [1, 1]} : vector<32x32xf32> to vector<32x1xf32>
    %34 = tpu.concatenate %32, %33 in 1 : vector<32x31xf32>, vector<32x1xf32> -> vector<32x32xf32>
    %cst_8 = arith.constant 0.000000e+00 : f32
    %35 = vector.broadcast %cst_8 : f32 to vector<32x32xf32>
    %36 = arith.select %31, %35, %34 : vector<32x32xi1>, vector<32x32xf32>
    %37 = tpu.concatenate %29, %5, %36 in 0 : vector<32x32xf32>, vector<32x32xf32>, vector<32x32xf32> -> vector<96x32xf32>
    %c0_9 = arith.constant 0 : index
    %c0_10 = arith.constant 0 : index
    %38 = vector.load %arg2[%c0_9, %c0_10] : memref<16x96xf32, #tpu.memory_space<vmem>>, vector<16x96xf32>
    %cst_11 = arith.constant dense<0.000000e+00> : vector<16x32xf32>
    %39 = tpu.matmul %38, %37, %cst_11 {dimension_numbers = #tpu.dot_dimension_numbers<[1], [0], [0], [1], [0, 0, 1, 1], [], []>} : vector<16x96xf32>, vector<96x32xf32>, vector<16x32xf32> -> vector<16x32xf32>
    %40 = math.tanh %39 : vector<16x32xf32>
    %c0_12 = arith.constant 0 : index
    %c0_13 = arith.constant 0 : index
    %41 = vector.load %arg3[%c0_12, %c0_13] : memref<32x16xf32, #tpu.memory_space<vmem>>, vector<32x16xf32>
    %cst_14 = arith.constant dense<0.000000e+00> : vector<32x32xf32>
    %42 = tpu.matmul %41, %40, %cst_14 {dimension_numbers = #tpu.dot_dimension_numbers<[1], [0], [0], [1], [0, 0, 1, 1], [], []>} : vector<32x16xf32>, vector<16x32xf32>, vector<32x32xf32> -> vector<32x32xf32>
    %43 = arith.addf %4, %42 : vector<32x32xf32>
    %44 = vector.extract_strided_slice %43 {offsets = [0, 0], sizes = [32, 16], strides = [1, 1]} : vector<32x32xf32> to vector<32x16xf32>
    %c0_15 = arith.constant 0 : index
    %c0_16 = arith.constant 0 : index
    %c0_17 = arith.constant 0 : index
    %45 = vector.load %arg4[%c0_15, %c0_16, %c0_17] : memref<2x32x16xf32, #tpu.memory_space<vmem>>, vector<1x32x16xf32>
    %46 = vector.shape_cast %45 : vector<1x32x16xf32> to vector<32x16xf32>
    %47 = vector.shape_cast %44 : vector<32x16xf32> to vector<1x32x16xf32>
    tpu.vector_store %arg4[%c0_15, %c0_16, %c0_17], %47 {strides = array<i32>} : memref<2x32x16xf32, #tpu.memory_space<vmem>>, vector<1x32x16xf32>,
    %48 = vector.extract_strided_slice %43 {offsets = [0, 16], sizes = [32, 16], strides = [1, 1]} : vector<32x32xf32> to vector<32x16xf32>
    %c1_18 = arith.constant 1 : index
    %c0_19 = arith.constant 0 : index
    %c0_20 = arith.constant 0 : index
    %49 = vector.load %arg4[%c1_18, %c0_19, %c0_20] : memref<2x32x16xf32, #tpu.memory_space<vmem>>, vector<1x32x16xf32>
    %50 = vector.shape_cast %49 : vector<1x32x16xf32> to vector<32x16xf32>
    %51 = vector.shape_cast %48 : vector<32x16xf32> to vector<1x32x16xf32>
    tpu.vector_store %arg4[%c1_18, %c0_19, %c0_20], %51 {strides = array<i32>} : memref<2x32x16xf32, #tpu.memory_space<vmem>>, vector<1x32x16xf32>,
    return
  }
  func.func @transform_0(%arg0: i32) -> (i32, i32, i32) {
    %c0_i32 = arith.constant 0 : i32
    %c0_i32_0 = arith.constant 0 : i32
    %c0_i32_1 = arith.constant 0 : i32
    %c0_i32_2 = arith.constant 0 : i32
    return %c0_i32, %c0_i32_0, %c0_i32_1 : i32, i32, i32
  }
  func.func @transform_1(%arg0: i32) -> (i32, i32) {
    %c0_i32 = arith.constant 0 : i32
    %c0_i32_0 = arith.constant 0 : i32
    %c0_i32_1 = arith.constant 0 : i32
    return %c0_i32, %c0_i32_0 : i32, i32
  }
  func.func @transform_2(%arg0: i32) -> (i32, i32) {
    %c0_i32 = arith.constant 0 : i32
    %c0_i32_0 = arith.constant 0 : i32
    %c0_i32_1 = arith.constant 0 : i32
    return %c0_i32, %c0_i32_0 : i32, i32
  }
  func.func @transform_3(%arg0: i32) -> (i32, i32, i32) {
    %c0_i32 = arith.constant 0 : i32
    %c0_i32_0 = arith.constant 0 : i32
    %c0_i32_1 = arith.constant 0 : i32
    %c0_i32_2 = arith.constant 0 : i32
    return %c0_i32, %c0_i32_0, %c0_i32_1 : i32, i32, i32
  }
}

</mosaic_0001>

<llo_original>
// kernel: tpu_custom_call.1
$region0: #{tpu_custom_call.1}
  #allocation0 [shape = 'u32[]', space=smem, size = 0x4, offset = 0x4, fixed_abs, tag = 'smem constant byte address 0x4 - core index']
  #allocation1 [shape = 'u32[144,128]{1,0:T(1,128)}', space=vmem, size = 0x12000, scoped, tag = 'internal scratch']
  %s0 = inlined_call_operand.vmem [shape: f32[2,32,16], index: 0, kind: input, shape index: {}]
  %s1 = inlined_call_operand.vmem [shape: f32[16,96], index: 1, kind: input, shape index: {}]
  %s2 = inlined_call_operand.vmem [shape: f32[32,16], index: 2, kind: input, shape index: {}]
  %s3 = inlined_call_operand.vmem [shape: f32[2,32,16], index: 3, kind: output, shape index: {}]
  %s4 = sld [smem:[#allocation0]]
  $region22: #{tpu_custom_call.1} parent=0
    _
  %s6 = ssub.s32 1, %s4
  %s7 = scalar_select 0, %s6, %s4
  // Predicated region
  $region2: #{tpu_custom_call.1} parent=0 // pred_check
    _
  $region3: #{tpu_custom_call.1} parent=0 // pred_check_branch
    %9 = sbr.rel (0) target = $region5
  $region4: #{tpu_custom_call.1} parent=0 // pred_region
    _
  $region5: #{tpu_custom_call.1} parent=0 // pred_fallthru
    _
  // Predicated region
  $region6: #{tpu_custom_call.1} parent=0 // pred_check
    _
  $region7: #{tpu_custom_call.1} parent=0 // pred_check_branch
    %11 = sbr.rel (0) target = $region9
  $region8: #{tpu_custom_call.1} parent=0 // pred_region
    _
  $region9: #{tpu_custom_call.1} parent=0 // pred_fallthru
    _
  // Predicated region
  $region10: #{tpu_custom_call.1} parent=0 // pred_check
    _
  $region11: #{tpu_custom_call.1} parent=0 // pred_check_branch
    %13 = sbr.rel (0) target = $region13
  $region12: #{tpu_custom_call.1} parent=0 // pred_region
    _
  $region13: #{tpu_custom_call.1} parent=0 // pred_fallthru
    _
  %v14 = vld [vmem:[%s0] sm:$0xff]
  %v15 = vld [vmem:[%s0 + $0x8] sm:$0xff]
  %v16 = vld [vmem:[%s0 + $0x10] sm:$0xff]
  %v17 = vld [vmem:[%s0 + $0x18] sm:$0xff]
  %s18 = scalar_lea.vmem %s0, 32
  %v19 = vld [vmem:[%s18] sm:$0xff]
  %v20 = vld [vmem:[%s18 + $0x8] sm:$0xff]
  %v21 = vld [vmem:[%s18 + $0x10] sm:$0xff]
  %v22 = vld [vmem:[%s18 + $0x18] sm:$0xff]
  %27 = vrot.lane.b32.xlu0 %v19, 16
  %v28 = vpop.permute.xlu0 %27
  %29 = vrot.lane.b32.xlu0 %v20, 16
  %v30 = vpop.permute.xlu0 %29
  %31 = vrot.lane.b32.xlu0 %v21, 16
  %v32 = vpop.permute.xlu0 %31
  %33 = vrot.lane.b32.xlu0 %v22, 16
  %v34 = vpop.permute.xlu0 %33
  %vm39 = vcmask 130048
  %v40 = vsel %vm39, %v14, %v28
  %v41 = vsel %vm39, %v15, %v30
  %v42 = vsel %vm39, %v16, %v32
  %v43 = vsel %vm39, %v17, %v34
  %v44 = vtanh.pop %v40
  %v45 = vtanh.pop %v41
  %v46 = vtanh.pop %v42
  %v47 = vtanh.pop %v43
  %v48 = vlaneseq
  %v49 = vand.u32 %v48, 127
  %vm50 = vcmp.lt.s32.totalorder %v49, 0
  %v51 = vsub.s32 0, %v49
  %v52 = vsel %vm50, %v51, %v49
  %v53 = vshrl.u32 %v52, 4
  %v54 = vand.u32 %v52, 15
  %v55 = vsub.s32 0, %v54
  %v56 = vsel %vm50, %v55, %v54
  %vm57 = vcmp.ne.s32.totalorder %v56, 0
  %vm58 = vcmp.lt.s32.totalorder %v56, 0
  %vm59 = vmand %vm58, %vm57
  %v60 = vadd.s32 %v56, 16
  %v61 = vsel %vm59, %v60, %v56
  %vm62 = vcmp.eq.s32.totalorder %v61, 0
  %67 = vrot.lane.b32.xlu0 %v44, 97
  %v68 = vpop.permute.xlu0 %67
  %69 = vrot.lane.b32.xlu0 %v45, 97
  %v70 = vpop.permute.xlu0 %69
  %71 = vrot.lane.b32.xlu0 %v46, 97
  %v72 = vpop.permute.xlu0 %71
  %73 = vrot.lane.b32.xlu0 %v47, 97
  %v74 = vpop.permute.xlu0 %73
  %79 = vrot.lane.b32.xlu0 %v44, 1
  %v80 = vpop.permute.xlu0 %79
  %81 = vrot.lane.b32.xlu0 %v45, 1
  %v82 = vpop.permute.xlu0 %81
  %83 = vrot.lane.b32.xlu0 %v46, 1
  %v84 = vpop.permute.xlu0 %83
  %85 = vrot.lane.b32.xlu0 %v47, 1
  %v86 = vpop.permute.xlu0 %85
  %vm91 = vcmask 7168
  %v92 = vsel %vm91, %v68, %v80
  %v93 = vsel %vm91, %v70, %v82
  %v94 = vsel %vm91, %v72, %v84
  %v95 = vsel %vm91, %v74, %v86
  %v96 = vsel %vm62, 0.0, %v92
  %v97 = vsel %vm62, 0.0, %v93
  %v98 = vsel %vm62, 0.0, %v94
  %v99 = vsel %vm62, 0.0, %v95
  %vm100 = vcmp.eq.s32.totalorder %v61, 15
  %101 = vrot.lane.b32.xlu0 %v44, 127
  %v102 = vpop.permute.xlu0 %101
  %103 = vrot.lane.b32.xlu0 %v45, 127
  %v104 = vpop.permute.xlu0 %103
  %105 = vrot.lane.b32.xlu0 %v46, 127
  %v106 = vpop.permute.xlu0 %105
  %107 = vrot.lane.b32.xlu0 %v47, 127
  %v108 = vpop.permute.xlu0 %107
  %113 = vrot.lane.b32.xlu0 %v44, 31
  %v114 = vpop.permute.xlu0 %113
  %115 = vrot.lane.b32.xlu0 %v45, 31
  %v116 = vpop.permute.xlu0 %115
  %117 = vrot.lane.b32.xlu0 %v46, 31
  %v118 = vpop.permute.xlu0 %117
  %119 = vrot.lane.b32.xlu0 %v47, 31
  %v120 = vpop.permute.xlu0 %119
  %vm125 = vcmask 252928
  %v126 = vsel %vm125, %v102, %v114
  %v127 = vsel %vm125, %v104, %v116
  %v128 = vsel %vm125, %v106, %v118
  %v129 = vsel %vm125, %v108, %v120
  %v130 = vsel %vm100, 0.0, %v126
  %v131 = vsel %vm100, 0.0, %v127
  %v132 = vsel %vm100, 0.0, %v128
  %v133 = vsel %vm100, 0.0, %v129
  %v134 = vld [vmem:[%s1] sm:$0xff]
  %v135 = vld [vmem:[%s1 + $0x8] sm:$0xff]
  %vm136 = vcmask 785408
  %v138 = vsel %vm136, %v134, 0
  %v141 = vsel %vm136, %v135, 0
  %143 = vmatprep.subr.mxu0 0.0
  %144 = vmatpush1.msra.mxu0 0.0
  %145 = vmatprep.subr.mxu0 0.0
  %146 = vmatpush1.msra.mxu0 0.0
  %147 = vmatprep.subr.mxu0 0.0
  %148 = vmatpush1.msra.mxu0 0.0
  %149 = vmatprep.subr.mxu0 0.0
  %150 = vmatpush1.msra.mxu0 0.0
  %151 = vmatprep.subr.mxu0 0.0
  %152 = vmatpush1.msra.mxu0 %v133
  %153 = vmatprep.subr.mxu0 0.0
  %154 = vmatpush1.msra.mxu0 %v132
  %155 = vmatprep.subr.mxu0 0.0
  %156 = vmatpush1.msra.mxu0 %v131
  %157 = vmatprep.subr.mxu0 0.0
  %158 = vmatpush1.msra.mxu0 %v130
  %159 = vmatprep.subr.mxu0 0.0
  %160 = vmatpush1.msra.mxu0 %v47
  %161 = vmatprep.subr.mxu0 0.0
  %162 = vmatpush1.msra.mxu0 %v46
  %163 = vmatprep.subr.mxu0 0.0
  %164 = vmatpush1.msra.mxu0 %v45
  %165 = vmatprep.subr.mxu0 0.0
  %166 = vmatpush1.msra.mxu0 %v44
  %167 = vmatprep.subr.mxu0 0.0
  %168 = vmatpush1.msra.mxu0 %v99
  %169 = vmatprep.subr.mxu0 0.0
  %170 = vmatpush1.msra.mxu0 %v98
  %171 = vmatprep.subr.mxu0 0.0
  %172 = vmatpush1.msra.mxu0 %v97
  %173 = vmatprep.subr.mxu0 0.0
  %174 = vmatpush1.msra.mxu0 %v96
  %175 = vmatprep.subr.mxu0 0.0
  %176 = vmatpush2.msra.mxu0 0.0
  %177 = vmatprep.subr.mxu0 0.0
  %178 = vmatpush2.msra.mxu0 0.0
  %179 = vmatprep.subr.mxu0 0.0
  %180 = vmatpush2.msra.mxu0 0.0
  %181 = vmatprep.subr.mxu0 0.0
  %182 = vmatpush2.msra.mxu0 0.0
  %183 = vmatprep.subr.mxu0 0.0
  %184 = vmatpush2.msra.mxu0 0.0
  %185 = vmatprep.subr.mxu0 0.0
  %186 = vmatpush2.msra.mxu0 0.0
  %187 = vmatprep.subr.mxu0 0.0
  %188 = vmatpush2.msra.mxu0 0.0
  %189 = vmatprep.subr.mxu0 0.0
  %190 = vmatpush2.msra.mxu0 0.0
  %191 = vmatprep.subr.mxu0 0.0
  %192 = vmatpush2.msra.mxu0 0.0
  %193 = vmatprep.subr.mxu0 0.0
  %194 = vmatpush2.msra.mxu0 0.0
  %195 = vmatprep.subr.mxu0 0.0
  %196 = vmatpush2.msra.mxu0 0.0
  %197 = vmatprep.subr.mxu0 0.0
  %198 = vmatpush2.msra.mxu0 0.0
  %199 = vmatprep.subr.mxu0 0.0
  %200 = vmatpush2.msra.mxu0 0.0
  %201 = vmatprep.subr.mxu0 0.0
  %202 = vmatpush2.msra.mxu0 0.0
  %203 = vmatprep.subr.mxu0 0.0
  %204 = vmatpush2.msra.mxu0 0.0
  %205 = vmatprep.subr.mxu0 0.0
  %206 = vmatpush2.msra.mxu0 0.0
  %207 = vmatprep.mubr.f32.mxu0 0.0
  %208 = vmatmul.mubr.f32.gmra.mxu0 %v138
  %v209 = vpop.f32.mrf.mxu0
  %v210 = vadd.f32 0.0, %v209
  %v211 = vpop.f32.mrf.mxu0
  %212 = vmatprep.mubr.f32.mxu0 0.0
  %213 = vmatmul.mubr.f32.gmra.mxu0 %v141
  %v214 = vpop.f32.mrf.mxu0
  %v215 = vadd.f32 0.0, %v214
  %v216 = vpop.f32.mrf.mxu0
  %217 = vdwg.mxu0
  %v218 = vtanh.pop %v210
  %v219 = vtanh.pop %v215
  %v220 = vld [vmem:[%s2] sm:$0xff]
  %v221 = vld [vmem:[%s2 + $0x8] sm:$0xff]
  %v222 = vld [vmem:[%s2 + $0x10] sm:$0xff]
  %v223 = vld [vmem:[%s2 + $0x18] sm:$0xff]
  %v225 = vsel %vm39, %v220, 0
  %v228 = vsel %vm39, %v221, 0
  %v231 = vsel %vm39, %v222, 0
  %v234 = vsel %vm39, %v223, 0
  %236 = vmatprep.subr.mxu0 0.0
  %237 = vmatpush1.msra.mxu0 0.0
  %238 = vmatprep.subr.mxu0 0.0
  %239 = vmatpush1.msra.mxu0 0.0
  %240 = vmatprep.subr.mxu0 0.0
  %241 = vmatpush1.msra.mxu0 0.0
  %242 = vmatprep.subr.mxu0 0.0
  %243 = vmatpush1.msra.mxu0 0.0
  %244 = vmatprep.subr.mxu0 0.0
  %245 = vmatpush1.msra.mxu0 0.0
  %246 = vmatprep.subr.mxu0 0.0
  %247 = vmatpush1.msra.mxu0 0.0
  %248 = vmatprep.subr.mxu0 0.0
  %249 = vmatpush1.msra.mxu0 0.0
  %250 = vmatprep.subr.mxu0 0.0
  %251 = vmatpush1.msra.mxu0 0.0
  %252 = vmatprep.subr.mxu0 0.0
  %253 = vmatpush1.msra.mxu0 0.0
  %254 = vmatprep.subr.mxu0 0.0
  %255 = vmatpush1.msra.mxu0 0.0
  %256 = vmatprep.subr.mxu0 0.0
  %257 = vmatpush1.msra.mxu0 0.0
  %258 = vmatprep.subr.mxu0 0.0
  %259 = vmatpush1.msra.mxu0 0.0
  %260 = vmatprep.subr.mxu0 0.0
  %261 = vmatpush1.msra.mxu0 0.0
  %262 = vmatprep.subr.mxu0 0.0
  %263 = vmatpush1.msra.mxu0 0.0
  %264 = vmatprep.subr.mxu0 0.0
  %265 = vmatpush1.msra.mxu0 %v219
  %266 = vmatprep.subr.mxu0 0.0
  %267 = vmatpush1.msra.mxu0 %v218
  %268 = vmatprep.subr.mxu0 0.0
  %269 = vmatpush2.msra.mxu0 0.0
  %270 = vmatprep.subr.mxu0 0.0
  %271 = vmatpush2.msra.mxu0 0.0
  %272 = vmatprep.subr.mxu0 0.0
  %273 = vmatpush2.msra.mxu0 0.0
  %274 = vmatprep.subr.mxu0 0.0
  %275 = vmatpush2.msra.mxu0 0.0
  %276 = vmatprep.subr.mxu0 0.0
  %277 = vmatpush2.msra.mxu0 0.0
  %278 = vmatprep.subr.mxu0 0.0
  %279 = vmatpush2.msra.mxu0 0.0
  %280 = vmatprep.subr.mxu0 0.0
  %281 = vmatpush2.msra.mxu0 0.0
  %282 = vmatprep.subr.mxu0 0.0
  %283 = vmatpush2.msra.mxu0 0.0
  %284 = vmatprep.subr.mxu0 0.0
  %285 = vmatpush2.msra.mxu0 0.0
  %286 = vmatprep.subr.mxu0 0.0
  %287 = vmatpush2.msra.mxu0 0.0
  %288 = vmatprep.subr.mxu0 0.0
  %289 = vmatpush2.msra.mxu0 0.0
  %290 = vmatprep.subr.mxu0 0.0
  %291 = vmatpush2.msra.mxu0 0.0
  %292 = vmatprep.subr.mxu0 0.0
  %293 = vmatpush2.msra.mxu0 0.0
  %294 = vmatprep.subr.mxu0 0.0
  %295 = vmatpush2.msra.mxu0 0.0
  %296 = vmatprep.subr.mxu0 0.0
  %297 = vmatpush2.msra.mxu0 0.0
  %298 = vmatprep.subr.mxu0 0.0
  %299 = vmatpush2.msra.mxu0 0.0
  %300 = vmatprep.mubr.f32.mxu0 0.0
  %301 = vmatmul.mubr.f32.gmra.mxu0 %v225
  %v302 = vpop.f32.mrf.mxu0
  %v303 = vadd.f32 0.0, %v302
  %v304 = vpop.f32.mrf.mxu0
  %305 = vmatprep.mubr.f32.mxu0 0.0
  %306 = vmatmul.mubr.f32.gmra.mxu0 %v228
  %v307 = vpop.f32.mrf.mxu0
  %v308 = vadd.f32 0.0, %v307
  %v309 = vpop.f32.mrf.mxu0
  %310 = vmatprep.mubr.f32.mxu0 0.0
  %311 = vmatmul.mubr.f32.gmra.mxu0 %v231
  %v312 = vpop.f32.mrf.mxu0
  %v313 = vadd.f32 0.0, %v312
  %v314 = vpop.f32.mrf.mxu0
  %315 = vmatprep.mubr.f32.mxu0 0.0
  %316 = vmatmul.mubr.f32.gmra.mxu0 %v234
  %v317 = vpop.f32.mrf.mxu0
  %v318 = vadd.f32 0.0, %v317
  %v319 = vpop.f32.mrf.mxu0
  %320 = vdwg.mxu0
  %v321 = vadd.f32 %v40, %v303
  %v322 = vadd.f32 %v41, %v308
  %v323 = vadd.f32 %v42, %v313
  %v324 = vadd.f32 %v43, %v318
  %325 = vst.msk [vmem:[%s3] sm:$0xff] %vm39, %v321
  %326 = vst.msk [vmem:[%s3 + $0x8] sm:$0xff] %vm39, %v322
  %327 = vst.msk [vmem:[%s3 + $0x10] sm:$0xff] %vm39, %v323
  %328 = vst.msk [vmem:[%s3 + $0x18] sm:$0xff] %vm39, %v324
  %333 = vrot.lane.b32.xlu0 %v321, 112
  %v334 = vpop.permute.xlu0 %333
  %335 = vrot.lane.b32.xlu0 %v322, 112
  %v336 = vpop.permute.xlu0 %335
  %337 = vrot.lane.b32.xlu0 %v323, 112
  %v338 = vpop.permute.xlu0 %337
  %339 = vrot.lane.b32.xlu0 %v324, 112
  %v340 = vpop.permute.xlu0 %339
  %s345 = scalar_lea.vmem %s3, 32
  %346 = vst.msk [vmem:[%s345] sm:$0xff] %vm39, %v334
  %347 = vst.msk [vmem:[%s345 + $0x8] sm:$0xff] %vm39, %v336
  %348 = vst.msk [vmem:[%s345 + $0x10] sm:$0xff] %vm39, %v338
  %349 = vst.msk [vmem:[%s345 + $0x18] sm:$0xff] %vm39, %v340
  // Predicated region
  $region14: #{tpu_custom_call.1} parent=0 // pred_check
    _
  $region15: #{tpu_custom_call.1} parent=0 // pred_check_branch
    %351 = sbr.rel (0) target = $region17
  $region16: #{tpu_custom_call.1} parent=0 // pred_region
    _
  $region17: #{tpu_custom_call.1} parent=0 // pred_fallthru
    _
  // Predicated region
  $region18: #{tpu_custom_call.1} parent=0 // pred_check
    _
  $region19: #{tpu_custom_call.1} parent=0 // pred_check_branch
    %353 = sbr.rel (0) target = $region21
  $region20: #{tpu_custom_call.1} parent=0 // pred_region
    _
  $region21: #{tpu_custom_call.1} parent=0 // pred_fallthru
    _

</llo_original>
